<compile_context>
chip_gen: v7x
topology: tpu7x:2x2x1
jax: 0.10.0
libtpu: 0.0.40
codegen_flags: <defaults>
</compile_context>

<pallas_src>
import jax
import jax.numpy as jnp
from jax import lax
from jax.experimental import pallas as pl
from jax.experimental.pallas import tpu as pltpu

SMOOTH = 1.0
EPS = 1e-8
WEIGHT_CE = 1.0
WEIGHT_DICE = 1.0

_VMEM_DATA_BUDGET = 20 * 1024 * 1024   # working-set budget per grid step (safe on v5e/v6e/v7x)
_VMEM_LIMIT_BYTES = 40 * 1024 * 1024   # scoped VMEM limit handed to Mosaic
_MAX_TILE = 16384


def _pick_tile(B, C, N):
    """Largest multiple of 128 dividing N whose working set fits the VMEM budget."""
    # bytes per lane of tile width: 2x double-buffered logits, 2x labels,
    # ~6 live f32 (B, C, tile) temporaries inside the body.
    per_lane = (2 * B * C + 2 * B + 6 * B * C) * 4
    tile = min(_VMEM_DATA_BUDGET // per_lane, N, _MAX_TILE)
    tile = max((tile // 128) * 128, 128)
    while N % tile != 0:        # N is a multiple of 128, so this terminates at 128
        tile -= 128
    return tile


def dc_ce_kernel(x_ref, t_ref, tp_ref, fp_ref, fn_ref, ce_ref):
    """One spatial tile per grid step; emits per-tile partial statistics.

    x_ref: (B, C, T) logits tile
    t_ref: (B, 1, T) int32 label tile
    tp/fp/fn_ref: (1, B, C) per-tile partial dice statistics
    ce_ref: (1, 1, 1) per-tile CE sum
    """
    x = x_ref[...].astype(jnp.float32)            # (B, C, T)
    labels = t_ref[...]                           # (B, 1, T) int32

    # softmax over the channel axis (max-shift reused for CE as well)
    m = jnp.max(x, axis=1, keepdims=True)         # (B, 1, T)
    xm = x - m
    e = jnp.exp(xm)
    denom = jnp.sum(e, axis=1, keepdims=True)     # (B, 1, T)
    p = e * pl.reciprocal(denom, approx=False)    # softmax probabilities

    # one-hot of the label map via channel iota (== torch scatter_ onehot)
    ch = lax.broadcasted_iota(jnp.int32, x.shape, 1)
    onehot = (ch == labels).astype(jnp.float32)   # (B, C, T)

    # soft-dice statistics, summed over this spatial tile (batch_dice=False).
    # fp / fn via algebra: fp = sum(p) - tp, fn = count(label) - tp.
    tp = jnp.sum(p * onehot, axis=2)              # (B, C)
    sum_p = jnp.sum(p, axis=2)                    # (B, C)
    cnt = jnp.sum(onehot, axis=2)                 # (B, C)
    tp_ref[...] = tp[None]
    fp_ref[...] = (sum_p - tp)[None]
    fn_ref[...] = (cnt - tp)[None]

    # cross-entropy sum over this tile:
    #   CE(pixel) = log(sum_c exp(x - m)) - (x[label] - m)
    ce = jnp.sum(jnp.log(denom)) - jnp.sum(xm * onehot)
    ce_ref[...] = ce.reshape(1, 1, 1)


def dc_and_ce_loss(net_output, target, *, tile=None):
    """net_output: (B, C, H, W) float logits; target: (B, 1, H, W) float label map."""
    B, C, H, W = net_output.shape
    N = H * W
    assert N % 128 == 0, "spatial size must be a multiple of 128"
    if tile is None:
        tile = _pick_tile(B, C, N)
    assert N % tile == 0
    G = N // tile

    x3 = net_output.reshape(B, C, N)
    # int32 labels (truncation == torch .long()); avoids per-tile float->int casts.
    t3 = target.reshape(B, 1, N).astype(jnp.int32)

    tp_p, fp_p, fn_p, ce_p = pl.pallas_call(
        dc_ce_kernel,
        out_shape=(
            jax.ShapeDtypeStruct((G, B, C), jnp.float32),
            jax.ShapeDtypeStruct((G, B, C), jnp.float32),
            jax.ShapeDtypeStruct((G, B, C), jnp.float32),
            jax.ShapeDtypeStruct((G, 1, 1), jnp.float32),
        ),
        grid_spec=pltpu.PrefetchScalarGridSpec(
            num_scalar_prefetch=0,
            grid=(G,),
            in_specs=[
                pl.BlockSpec((B, C, tile), lambda i: (0, 0, i)),
                pl.BlockSpec((B, 1, tile), lambda i: (0, 0, i)),
            ],
            out_specs=[
                pl.BlockSpec((1, B, C), lambda i: (i, 0, 0)),
                pl.BlockSpec((1, B, C), lambda i: (i, 0, 0)),
                pl.BlockSpec((1, B, C), lambda i: (i, 0, 0)),
                pl.BlockSpec((1, 1, 1), lambda i: (i, 0, 0)),
            ],
        ),
        compiler_params=pltpu.CompilerParams(
            # no carried state across the spatial axis -> it can be split across
            # both TensorCores on v7x; harmless on single-TC v5e/v6e.
            dimension_semantics=("parallel",),
            vmem_limit_bytes=_VMEM_LIMIT_BYTES,
        ),
    )(x3, t3)

    # Tiny final combine (dice + CE mean) outside the kernel.
    tp = jnp.sum(tp_p, axis=0)
    fp = jnp.sum(fp_p, axis=0)
    fn = jnp.sum(fn_p, axis=0)
    dc = (2.0 * tp + SMOOTH) / (2.0 * tp + fp + fn + SMOOTH + EPS)
    dc_loss = -jnp.mean(dc)                          # do_bg=True -> mean over (B, C)
    ce_loss = jnp.sum(ce_p) / float(B * N)           # CE reduction='mean'
    return WEIGHT_CE * ce_loss + WEIGHT_DICE * dc_loss


def reference_loss(net_output, target):
    """Pure-JAX reference mirroring the PyTorch module semantics."""
    B, C, H, W = net_output.shape
    p = jax.nn.softmax(net_output, axis=1)
    labels = target[:, 0].astype(jnp.int32)
    onehot = jax.nn.one_hot(labels, C, axis=1, dtype=jnp.float32)
    tp = jnp.sum(p * onehot, axis=(2, 3))
    fp = jnp.sum(p * (1.0 - onehot), axis=(2, 3))
    fn = jnp.sum((1.0 - p) * onehot, axis=(2, 3))
    dc = (2.0 * tp + SMOOTH) / (2.0 * tp + fp + fn + SMOOTH + EPS)
    dc_loss = -jnp.mean(dc)
    logp = jax.nn.log_softmax(net_output, axis=1)
    ce_loss = jnp.mean(-jnp.sum(logp * onehot, axis=1))
    return WEIGHT_CE * ce_loss + WEIGHT_DICE * dc_loss


if __name__ == "__main__":
    B, C, H, W = 2, 4, 16, 16
    key = jax.random.PRNGKey(0)
    k_logits, k_labels = jax.random.split(key)
    net_output = jax.random.normal(k_logits, (B, C, H, W), dtype=jnp.float32)
    # target is a float label map of shape (B, 1, H, W) with values in [0, C)
    target = jax.random.randint(k_labels, (B, 1, H, W), 0, C).astype(jnp.float32)

    # TODO(synk): ignore_label / loss_mask path of DC_and_CE_loss not implemented
    # (module default ignore_label=None).
    loss = dc_and_ce_loss(net_output, target)
    loss = jax.block_until_ready(loss)

    ref = jax.block_until_ready(reference_loss(net_output, target))
    assert jnp.allclose(loss, ref, rtol=1e-4, atol=1e-5), (loss, ref)

    print("KERNEL_OK")
</pallas_src>

<mosaic_0001>
module attributes {stable_mosaic.version = 11 : i64} {
  func.func @dc_ce_kernel(%arg0: i32, %arg1: memref<2x4x256xf32, #tpu.memory_space<vmem>>, %arg2: memref<2x1x256xi32, #tpu.memory_space<vmem>>, %arg3: memref<1x2x4xf32, #tpu.memory_space<vmem>>, %arg4: memref<1x2x4xf32, #tpu.memory_space<vmem>>, %arg5: memref<1x2x4xf32, #tpu.memory_space<vmem>>, %arg6: memref<1x1x1xf32, #tpu.memory_space<vmem>>) attributes {dimension_semantics = [#tpu.dimension_semantics<parallel>], iteration_bounds = array<i64: 1>, scalar_prefetch = 0 : i64, scratch_operands = 0 : i64, tpu.core_type = #tpu.core_type<tc>, window_params = [{transform_indices = @transform_0, window_bounds = array<i64: 2, 4, 256>}, {transform_indices = @transform_1, window_bounds = array<i64: 2, 1, 256>}, {transform_indices = @transform_2, window_bounds = array<i64: 1, 2, 4>}, {transform_indices = @transform_3, window_bounds = array<i64: 1, 2, 4>}, {transform_indices = @transform_4, window_bounds = array<i64: 1, 2, 4>}, {transform_indices = @transform_5, window_bounds = array<i64: 1, 1, 1>}]} {
    %c0 = arith.constant 0 : index
    %c0_0 = arith.constant 0 : index
    %c0_1 = arith.constant 0 : index
    %0 = vector.load %arg1[%c0, %c0_0, %c0_1] : memref<2x4x256xf32, #tpu.memory_space<vmem>>, vector<2x4x256xf32>
    %c0_2 = arith.constant 0 : index
    %c0_3 = arith.constant 0 : index
    %c0_4 = arith.constant 0 : index
    %1 = vector.load %arg2[%c0_2, %c0_3, %c0_4] : memref<2x1x256xi32, #tpu.memory_space<vmem>>, vector<2x1x256xi32>
    %cst = arith.constant dense<0xFF800000> : vector<2x256xf32>
    %2 = vector.multi_reduction <maximumf>, %0, %cst [1] : vector<2x4x256xf32> to vector<2x256xf32>
    %3 = vector.shape_cast %2 : vector<2x256xf32> to vector<2x1x256xf32>
    %4 = vector.broadcast %3 : vector<2x1x256xf32> to vector<2x4x256xf32>
    %5 = arith.subf %0, %4 : vector<2x4x256xf32>
    %6 = math.exp %5 : vector<2x4x256xf32>
    %cst_5 = arith.constant dense<0.000000e+00> : vector<2x256xf32>
    %7 = vector.multi_reduction <add>, %6, %cst_5 [1] : vector<2x4x256xf32> to vector<2x256xf32>
    %8 = vector.shape_cast %7 : vector<2x256xf32> to vector<2x1x256xf32>
    %9 = tpu.reciprocal %8 : vector<2x1x256xf32> -> vector<2x1x256xf32>
    %10 = vector.broadcast %9 : vector<2x1x256xf32> to vector<2x4x256xf32>
    %11 = arith.mulf %6, %10 : vector<2x4x256xf32>
    %12 = tpu.iota {dimensions = array<i32: 1>} : vector<2x4x256xi32>
    %13 = vector.broadcast %1 : vector<2x1x256xi32> to vector<2x4x256xi32>
    %14 = arith.cmpi eq, %12, %13 : vector<2x4x256xi32>
    %15 = arith.extui %14 : vector<2x4x256xi1> to vector<2x4x256xi32>
    %16 = arith.sitofp %15 : vector<2x4x256xi32> to vector<2x4x256xf32>
    %17 = arith.mulf %11, %16 : vector<2x4x256xf32>
    %cst_6 = arith.constant dense<0.000000e+00> : vector<2x4xf32>
    %18 = vector.multi_reduction <add>, %17, %cst_6 [2] : vector<2x4x256xf32> to vector<2x4xf32>
    %cst_7 = arith.constant dense<0.000000e+00> : vector<2x4xf32>
    %19 = vector.multi_reduction <add>, %11, %cst_7 [2] : vector<2x4x256xf32> to vector<2x4xf32>
    %cst_8 = arith.constant dense<0.000000e+00> : vector<2x4xf32>
    %20 = vector.multi_reduction <add>, %16, %cst_8 [2] : vector<2x4x256xf32> to vector<2x4xf32>
    %21 = vector.shape_cast %18 : vector<2x4xf32> to vector<1x2x4xf32>
    %c0_9 = arith.constant 0 : index
    %c0_10 = arith.constant 0 : index
    %c0_11 = arith.constant 0 : index
    %22 = vector.load %arg3[%c0_9, %c0_10, %c0_11] : memref<1x2x4xf32, #tpu.memory_space<vmem>>, vector<1x2x4xf32>
    tpu.vector_store %arg3[%c0_9, %c0_10, %c0_11], %21 {strides = array<i32>} : memref<1x2x4xf32, #tpu.memory_space<vmem>>, vector<1x2x4xf32>,
    %23 = arith.subf %19, %18 : vector<2x4xf32>
    %24 = vector.shape_cast %23 : vector<2x4xf32> to vector<1x2x4xf32>
    %c0_12 = arith.constant 0 : index
    %c0_13 = arith.constant 0 : index
    %c0_14 = arith.constant 0 : index
    %25 = vector.load %arg4[%c0_12, %c0_13, %c0_14] : memref<1x2x4xf32, #tpu.memory_space<vmem>>, vector<1x2x4xf32>
    tpu.vector_store %arg4[%c0_12, %c0_13, %c0_14], %24 {strides = array<i32>} : memref<1x2x4xf32, #tpu.memory_space<vmem>>, vector<1x2x4xf32>,
    %26 = arith.subf %20, %18 : vector<2x4xf32>
    %27 = vector.shape_cast %26 : vector<2x4xf32> to vector<1x2x4xf32>
    %c0_15 = arith.constant 0 : index
    %c0_16 = arith.constant 0 : index
    %c0_17 = arith.constant 0 : index
    %28 = vector.load %arg5[%c0_15, %c0_16, %c0_17] : memref<1x2x4xf32, #tpu.memory_space<vmem>>, vector<1x2x4xf32>
    tpu.vector_store %arg5[%c0_15, %c0_16, %c0_17], %27 {strides = array<i32>} : memref<1x2x4xf32, #tpu.memory_space<vmem>>, vector<1x2x4xf32>,
    %29 = math.log %8 : vector<2x1x256xf32>
    %30 = vector.shape_cast %29 : vector<2x1x256xf32> to vector<1x2x1x256xf32>
    %cst_18 = arith.constant dense<0.000000e+00> : vector<1xf32>
    %31 = vector.multi_reduction <add>, %30, %cst_18 [1, 2, 3] : vector<1x2x1x256xf32> to vector<1xf32>
    %32 = vector.shape_cast %31 : vector<1xf32> to vector<1x1x1x1xf32>
    %33 = vector.extract %32[0, 0, 0, 0] : f32 from vector<1x1x1x1xf32>
    %34 = arith.mulf %5, %16 : vector<2x4x256xf32>
    %35 = vector.shape_cast %34 : vector<2x4x256xf32> to vector<1x2x4x256xf32>
    %cst_19 = arith.constant dense<0.000000e+00> : vector<1xf32>
    %36 = vector.multi_reduction <add>, %35, %cst_19 [1, 2, 3] : vector<1x2x4x256xf32> to vector<1xf32>
    %37 = vector.shape_cast %36 : vector<1xf32> to vector<1x1x1x1xf32>
    %38 = vector.extract %37[0, 0, 0, 0] : f32 from vector<1x1x1x1xf32>
    %39 = arith.subf %33, %38 : f32
    %40 = vector.broadcast %39 : f32 to vector<1x1x1xf32>
    %c0_20 = arith.constant 0 : index
    %c0_21 = arith.constant 0 : index
    %c0_22 = arith.constant 0 : index
    %41 = vector.load %arg6[%c0_20, %c0_21, %c0_22] : memref<1x1x1xf32, #tpu.memory_space<vmem>>, vector<1x1x1xf32>
    tpu.vector_store %arg6[%c0_20, %c0_21, %c0_22], %40 {strides = array<i32>} : memref<1x1x1xf32, #tpu.memory_space<vmem>>, vector<1x1x1xf32>,
    return
  }
  func.func @transform_0(%arg0: i32) -> (i32, i32, i32) {
    %c0_i32 = arith.constant 0 : i32
    %c0_i32_0 = arith.constant 0 : i32
    %c0_i32_1 = arith.constant 0 : i32
    return %c0_i32, %c0_i32_0, %arg0 : i32, i32, i32
  }
  func.func @transform_1(%arg0: i32) -> (i32, i32, i32) {
    %c0_i32 = arith.constant 0 : i32
    %c0_i32_0 = arith.constant 0 : i32
    %c0_i32_1 = arith.constant 0 : i32
    return %c0_i32, %c0_i32_0, %arg0 : i32, i32, i32
  }
  func.func @transform_2(%arg0: i32) -> (i32, i32, i32) {
    %c0_i32 = arith.constant 0 : i32
    %c0_i32_0 = arith.constant 0 : i32
    %c0_i32_1 = arith.constant 0 : i32
    return %arg0, %c0_i32, %c0_i32_0 : i32, i32, i32
  }
  func.func @transform_3(%arg0: i32) -> (i32, i32, i32) {
    %c0_i32 = arith.constant 0 : i32
    %c0_i32_0 = arith.constant 0 : i32
    %c0_i32_1 = arith.constant 0 : i32
    return %arg0, %c0_i32, %c0_i32_0 : i32, i32, i32
  }
  func.func @transform_4(%arg0: i32) -> (i32, i32, i32) {
    %c0_i32 = arith.constant 0 : i32
    %c0_i32_0 = arith.constant 0 : i32
    %c0_i32_1 = arith.constant 0 : i32
    return %arg0, %c0_i32, %c0_i32_0 : i32, i32, i32
  }
  func.func @transform_5(%arg0: i32) -> (i32, i32, i32) {
    %c0_i32 = arith.constant 0 : i32
    %c0_i32_0 = arith.constant 0 : i32
    %c0_i32_1 = arith.constant 0 : i32
    return %arg0, %c0_i32, %c0_i32_0 : i32, i32, i32
  }
}

</mosaic_0001>

<llo_original>
// kernel: tpu_custom_call.1
$region0: #{tpu_custom_call.1}
  #allocation0 [shape = 'u32[]', space=smem, size = 0x4, offset = 0x4, fixed_abs, tag = 'smem constant byte address 0x4 - core index']
  #allocation1 [shape = 'u32[144,128]{1,0:T(1,128)}', space=vmem, size = 0x12000, scoped, tag = 'internal scratch']
  %s0 = inlined_call_operand.hbm [shape: f32[2,4,256], index: 0, kind: input, shape index: {}]
  %s1 = inlined_call_operand.hbm [shape: s32[2,1,256], index: 1, kind: input, shape index: {}]
  %s2 = inlined_call_operand.hbm [shape: f32[1,2,4], index: 2, kind: output, shape index: {0}]
  %s3 = inlined_call_operand.hbm [shape: f32[1,2,4], index: 3, kind: output, shape index: {1}]
  %s4 = inlined_call_operand.hbm [shape: f32[1,2,4], index: 4, kind: output, shape index: {2}]
  %s5 = inlined_call_operand.hbm [shape: f32[1,1,1], index: 5, kind: output, shape index: {3}]
  %6 = xla_tuple %s2, %s3, %s4, %s5
  %s7 = sld [smem:[#allocation0]]
  $region50: #{tpu_custom_call.1} parent=0
    _
  %s9 = ssub.s32 1, %s7
  %s10 = scalar_select 0, %s9, %s7
  $region1: #{tpu_custom_call.1} parent=0
    #allocation2 [shape = 'u8[8192]{0}', space=vmem, size = 0x2000, scoped, tag = 'input window, operand 0, single buffered']
    #allocation3 [shape = 's32[1]{0}', space=sflag, size = 0x4, scoped, tag = 'scoped memory for tpu_custom_call.1']
    #allocation4 [shape = 's32[1]{0}', space=sflag, size = 0x4, scoped, tag = 'scoped memory for tpu_custom_call.1']
    #allocation5 [shape = 'u8[2048]{0}', space=vmem, size = 0x800, scoped, tag = 'input window, operand 1, single buffered']
    #allocation6 [shape = 's32[1]{0}', space=sflag, size = 0x4, scoped, tag = 'scoped memory for tpu_custom_call.1']
    #allocation7 [shape = 'u8[1024]{0}', space=vmem, size = 0x400, scoped, tag = 'output window, operand 0, single buffered']
    #allocation8 [shape = 'u8[1024]{0}', space=vmem, size = 0x400, scoped, tag = 'output window, operand 1, single buffered']
    #allocation9 [shape = 's32[1]{0}', space=sflag, size = 0x4, scoped, tag = 'scoped memory for tpu_custom_call.1']
    #allocation10 [shape = 'u8[1024]{0}', space=vmem, size = 0x400, scoped, tag = 'output window, operand 2, single buffered']
    #allocation11 [shape = 'u8[512]{0}', space=vmem, size = 0x400, scoped, tag = 'output window, operand 3, single buffered']
    #allocation12 [shape = 's32[1]{0}', space=sflag, size = 0x4, scoped, tag = 'scoped memory for tpu_custom_call.1']
    %11 = vsyncpa [#allocation3], 0
    %12 = vsyncpa [#allocation6], 0
    %13 = vsyncpa [#allocation4], 0
    %14 = vsyncpa [#allocation9], 0
    %15 = vsyncpa [#allocation12], 0
    // Predicated region
    $region2: #{tpu_custom_call.1} parent=1 // pred_check
      _
    $region3: #{tpu_custom_call.1} parent=1 // pred_check_branch
      %17 = sbr.rel (0) target = $region5
    $region4: #{tpu_custom_call.1} parent=1 // pred_region
      %s19 = ssub.s32 256, 256
      %20 = vsyncadd [#allocation3], %s19
      %s21 = sshll.u32 [#allocation2], 4
      %s22 = int_to_ptr.vmem [resolvable:$true] %s21
      %27 = dma.hbm_to_vmem [thread:$0]  %s0, 256, %s22, [#allocation3], 128, 128, 8
    $region5: #{tpu_custom_call.1} parent=1 // pred_fallthru
      _
    // Predicated region
    $region6: #{tpu_custom_call.1} parent=1 // pred_check
      _
    $region7: #{tpu_custom_call.1} parent=1 // pred_check_branch
      %29 = sbr.rel (0) target = $region9
    $region8: #{tpu_custom_call.1} parent=1 // pred_region
      %s31 = ssub.s32 64, 64
      %32 = vsyncadd [#allocation6], %s31
      %s33 = sshll.u32 [#allocation5], 4
      %s34 = int_to_ptr.vmem [resolvable:$true] %s33
      %39 = dma.hbm_to_vmem [thread:$0]  %s1, 64, %s34, [#allocation6], 32, 32, 2
    $region9: #{tpu_custom_call.1} parent=1 // pred_fallthru
      _
    // Predicated region
    $region10: #{tpu_custom_call.1} parent=1 // pred_check
      _
    $region11: #{tpu_custom_call.1} parent=1 // pred_check_branch
      %41 = sbr.rel (0) target = $region13
    $region12: #{tpu_custom_call.1} parent=1 // pred_region
      %42 = dma.done [#allocation3], 256
    $region13: #{tpu_custom_call.1} parent=1 // pred_fallthru
      _
    // Predicated region
    $region14: #{tpu_custom_call.1} parent=1 // pred_check
      _
    $region15: #{tpu_custom_call.1} parent=1 // pred_check_branch
      %44 = sbr.rel (0) target = $region17
    $region16: #{tpu_custom_call.1} parent=1 // pred_region
      %45 = dma.done [#allocation6], 64
    $region17: #{tpu_custom_call.1} parent=1 // pred_fallthru
      _
    %v46 = vld [vmem:[#allocation2] sm:$0xff]
    %v47 = vld [vmem:[#allocation2 + $0x8] sm:$0xff]
    %v48 = vld [vmem:[#allocation5] sm:$0x3]
    %v49 = vld [vmem:[#allocation5 + $0x2] sm:$0x3]
    %v52 = vcombine.high %v46, %v46
    %v53 = vcombine.high %v47, %v47
    %vm56 = vcmask 1043456
    %v57 = vsel %vm56, %v46, -inf
    %v58 = vrot.slane %v57, 4
    %v59 = vmax.f32 %v57, %v58
    %v60 = vrot.slane %v59, 2
    %v61 = vmax.f32 %v59, %v60
    %v62 = vrot.slane %v61, 1
    %v63 = vmax.f32 %v61, %v62
    %v64 = vsel %vm56, %v52, -inf
    %v65 = vrot.slane %v64, 4
    %v66 = vmax.f32 %v64, %v65
    %v67 = vrot.slane %v66, 2
    %v68 = vmax.f32 %v66, %v67
    %v69 = vrot.slane %v68, 1
    %v70 = vmax.f32 %v68, %v69
    %v71 = vsel %vm56, %v47, -inf
    %v72 = vrot.slane %v71, 4
    %v73 = vmax.f32 %v71, %v72
    %v74 = vrot.slane %v73, 2
    %v75 = vmax.f32 %v73, %v74
    %v76 = vrot.slane %v75, 1
    %v77 = vmax.f32 %v75, %v76
    %v78 = vsel %vm56, %v53, -inf
    %v79 = vrot.slane %v78, 4
    %v80 = vmax.f32 %v78, %v79
    %v81 = vrot.slane %v80, 2
    %v82 = vmax.f32 %v80, %v81
    %v83 = vrot.slane %v82, 1
    %v84 = vmax.f32 %v82, %v83
    %v89 = vcombine.low %v63, %v70
    %v90 = vcombine.low %v77, %v84
    %v93 = vsub.f32 %v46, %v89
    %v94 = vsub.f32 %v47, %v90
    %v95 = vmul.f32 %v93, 1.442695
    %v96 = vpow.pop %v95
    %v97 = vmul.f32 %v94, 1.442695
    %v98 = vpow.pop %v97
    %v101 = vcombine.high %v96, %v96
    %v102 = vcombine.high %v98, %v98
    %v105 = vsel %vm56, %v96, 0.0
    %v106 = vrot.slane %v105, 4
    %v107 = vadd.f32 %v105, %v106
    %v108 = vrot.slane %v107, 2
    %v109 = vadd.f32 %v107, %v108
    %v110 = vrot.slane %v109, 1
    %v111 = vadd.f32 %v109, %v110
    %v112 = vsel %vm56, %v101, 0.0
    %v113 = vrot.slane %v112, 4
    %v114 = vadd.f32 %v112, %v113
    %v115 = vrot.slane %v114, 2
    %v116 = vadd.f32 %v114, %v115
    %v117 = vrot.slane %v116, 1
    %v118 = vadd.f32 %v116, %v117
    %v119 = vsel %vm56, %v98, 0.0
    %v120 = vrot.slane %v119, 4
    %v121 = vadd.f32 %v119, %v120
    %v122 = vrot.slane %v121, 2
    %v123 = vadd.f32 %v121, %v122
    %v124 = vrot.slane %v123, 1
    %v125 = vadd.f32 %v123, %v124
    %v126 = vsel %vm56, %v102, 0.0
    %v127 = vrot.slane %v126, 4
    %v128 = vadd.f32 %v126, %v127
    %v129 = vrot.slane %v128, 2
    %v130 = vadd.f32 %v128, %v129
    %v131 = vrot.slane %v130, 1
    %v132 = vadd.f32 %v130, %v131
    %v133 = vrcp.pop %v111
    %v134 = vrcp.pop %v118
    %v135 = vrcp.pop %v125
    %v136 = vrcp.pop %v132
    %v141 = vcombine.low %v133, %v134
    %v142 = vcombine.low %v135, %v136
    %v145 = vmul.f32 %v96, %v141
    %v146 = vmul.f32 %v98, %v142
    %v147 = vlaneseq
    %v148 = vshrl.u32 %v147, 7
    %v149 = vlaneseq
    %v150 = vshrl.u32 %v149, 7
    %v151 = vsub.s32 0, %v150
    %v152 = vrot.slane %v48, %v151
    %v153 = vlaneseq
    %v154 = vshrl.u32 %v153, 7
    %v155 = vsub.s32 1, %v154
    %v156 = vrot.slane %v48, %v155
    %v157 = vlaneseq
    %v158 = vshrl.u32 %v157, 7
    %v159 = vsub.s32 0, %v158
    %v160 = vrot.slane %v49, %v159
    %v161 = vlaneseq
    %v162 = vshrl.u32 %v161, 7
    %v163 = vsub.s32 1, %v162
    %v164 = vrot.slane %v49, %v163
    %vm165 = vcmp.eq.s32.totalorder %v148, %v152
    %vm166 = vcmp.eq.s32.totalorder %v148, %v156
    %vm167 = vcmp.eq.s32.totalorder %v148, %v160
    %vm168 = vcmp.eq.s32.totalorder %v148, %v164
    %v169 = vsel %vm165, 1, 0
    %v170 = vsel %vm166, 1, 0
    %v171 = vsel %vm167, 1, 0
    %v172 = vsel %vm168, 1, 0
    %v173 = vcvt.s32.f32 %v169
    %v174 = vcvt.s32.f32 %v170
    %v175 = vcvt.s32.f32 %v171
    %v176 = vcvt.s32.f32 %v172
    %v181 = vcombine.low %v173, %v174
    %v182 = vcombine.low %v175, %v176
    %v185 = vmul.f32 %v145, %v181
    %v186 = vmul.f32 %v146, %v182
    %v189 = vcombine.high %v185, %v185
    %v190 = vcombine.high %v186, %v186
    %v193 = vsel %vm56, %v185, 0.0
    %v194 = vsel %vm56, %v189, 0.0
    %v195 = vadd.f32 %v193, %v194
    %196 = vadd.xlane.f32.xlu0 %v195
    %v197 = vpop.xlane.xlu0 %196
    %v198 = vsel %vm56, %v186, 0.0
    %v199 = vsel %vm56, %v190, 0.0
    %v200 = vadd.f32 %v198, %v199
    %201 = vadd.xlane.f32.xlu0 %v200
    %v202 = vpop.xlane.xlu0 %201
    %v205 = vcombine.high %v145, %v145
    %v206 = vcombine.high %v146, %v146
    %v209 = vsel %vm56, %v145, 0.0
    %v210 = vsel %vm56, %v205, 0.0
    %v211 = vadd.f32 %v209, %v210
    %212 = vadd.xlane.f32.xlu0 %v211
    %v213 = vpop.xlane.xlu0 %212
    %v214 = vsel %vm56, %v146, 0.0
    %v215 = vsel %vm56, %v206, 0.0
    %v216 = vadd.f32 %v214, %v215
    %217 = vadd.xlane.f32.xlu0 %v216
    %v218 = vpop.xlane.xlu0 %217
    %v219 = vsel %vm56, %v173, 0.0
    %v220 = vsel %vm56, %v174, 0.0
    %v221 = vadd.f32 %v219, %v220
    %222 = vadd.xlane.f32.xlu0 %v221
    %v223 = vpop.xlane.xlu0 %222
    %v224 = vsel %vm56, %v175, 0.0
    %v225 = vsel %vm56, %v176, 0.0
    %v226 = vadd.f32 %v224, %v225
    %227 = vadd.xlane.f32.xlu0 %v226
    %v228 = vpop.xlane.xlu0 %227
    %v231 = vlaneseq
    %v232 = vand.u32 %v231, 127
    %v233 = vlaneseq
    %v234 = vshrl.u32 %v233, 7
    %v235 = vsub.s32 %v232, %v234
    %v236 = vrot.slane %v197, %v235
    %v237 = vlaneseq
    %v238 = vshrl.u32 %v237, 7
    %v239 = vsub.s32 %v232, %v238
    %v240 = vrot.slane %v202, %v239
    %vm241 = vcmask 1041409
    %v242 = vsel %vm241, %v240, %v236
    %vm244 = vcmask 25600
    %245 = vst.msk [vmem:[#allocation7] sm:$0x3] %vm244, %v242
    %v246 = vsub.f32 %v213, %v197
    %v247 = vsub.f32 %v218, %v202
    %v250 = vlaneseq
    %v251 = vshrl.u32 %v250, 7
    %v252 = vsub.s32 %v232, %v251
    %v253 = vrot.slane %v246, %v252
    %v254 = vlaneseq
    %v255 = vshrl.u32 %v254, 7
    %v256 = vsub.s32 %v232, %v255
    %v257 = vrot.slane %v247, %v256
    %v258 = vsel %vm241, %v257, %v253
    %260 = vst.msk [vmem:[#allocation8] sm:$0x3] %vm244, %v258
    %v261 = vsub.f32 %v223, %v197
    %v262 = vsub.f32 %v228, %v202
    %v265 = vlaneseq
    %v266 = vshrl.u32 %v265, 7
    %v267 = vsub.s32 %v232, %v266
    %v268 = vrot.slane %v261, %v267
    %v269 = vlaneseq
    %v270 = vshrl.u32 %v269, 7
    %v271 = vsub.s32 %v232, %v270
    %v272 = vrot.slane %v262, %v271
    %v273 = vsel %vm241, %v272, %v268
    %275 = vst.msk [vmem:[#allocation10] sm:$0x3] %vm244, %v273
    %v276 = vlog2.pop %v111
    %v277 = vmul.f32 %v276, 0.6931472
    %v278 = vlog2.pop %v118
    %v279 = vmul.f32 %v278, 0.6931472
    %v280 = vlog2.pop %v125
    %v281 = vmul.f32 %v280, 0.6931472
    %v282 = vlog2.pop %v132
    %v283 = vmul.f32 %v282, 0.6931472
    %vm284 = vcmask 1040384
    %v285 = vsel %vm284, %v277, 0.0
    %v286 = vsel %vm284, %v279, 0.0
    %v287 = vadd.f32 %v285, %v286
    %v288 = vsel %vm284, %v281, 0.0
    %v289 = vadd.f32 %v287, %v288
    %v290 = vsel %vm284, %v283, 0.0
    %v291 = vadd.f32 %v289, %v290
    %292 = vadd.xlane.f32.xlu0 %v291
    %v293 = vpop.xlane.xlu0 %292
    %v294 = vrot.slane %v293, 4
    %v295 = vadd.f32 %v293, %v294
    %v296 = vrot.slane %v295, 2
    %v297 = vadd.f32 %v295, %v296
    %v298 = vrot.slane %v297, 1
    %v299 = vadd.f32 %v297, %v298
    %s300 = vtos %v299
    %v301 = vmul.f32 %v93, %v181
    %v302 = vmul.f32 %v94, %v182
    %v305 = vcombine.high %v301, %v301
    %v306 = vcombine.high %v302, %v302
    %v309 = vsel %vm56, %v301, 0.0
    %v310 = vsel %vm56, %v305, 0.0
    %v311 = vadd.f32 %v309, %v310
    %v312 = vsel %vm56, %v302, 0.0
    %v313 = vadd.f32 %v311, %v312
    %v314 = vsel %vm56, %v306, 0.0
    %v315 = vadd.f32 %v313, %v314
    %316 = vadd.xlane.f32.xlu0 %v315
    %v317 = vpop.xlane.xlu0 %316
    %v318 = vrot.slane %v317, 4
    %v319 = vadd.f32 %v317, %v318
    %v320 = vrot.slane %v319, 2
    %v321 = vadd.f32 %v319, %v320
    %v322 = vrot.slane %v321, 1
    %v323 = vadd.f32 %v321, %v322
    %s324 = vtos %v323
    %s325 = ssub.f32 %s300, %s324
    %v326 = vstv %s325
    %vm327 = vcmask 0
    %328 = vst.msk [vmem:[#allocation11] sm:$0x1] %vm327, %v326
    // Predicated region
    $region18: #{tpu_custom_call.1} parent=1 // pred_check
      _
    $region19: #{tpu_custom_call.1} parent=1 // pred_check_branch
      %330 = sbr.rel (0) target = $region21
    $region20: #{tpu_custom_call.1} parent=1 // pred_region
      %s332 = ssub.s32 32, 32
      %333 = vsyncadd [#allocation4], %s332
      %s335 = sshll.u32 [#allocation7], 4
      %s336 = int_to_ptr.vmem [resolvable:$true] %s335
      %338 = dma.vmem_to_hbm [thread:$0]  %s336, 32, %s2, [#allocation4]
    $region21: #{tpu_custom_call.1} parent=1 // pred_fallthru
      _
    // Predicated region
    $region22: #{tpu_custom_call.1} parent=1 // pred_check
      _
    $region23: #{tpu_custom_call.1} parent=1 // pred_check_branch
      %340 = sbr.rel (0) target = $region25
    $region24: #{tpu_custom_call.1} parent=1 // pred_region
      %s342 = ssub.s32 32, 32
      %343 = vsyncadd [#allocation9], %s342
      %s345 = sshll.u32 [#allocation8], 4
      %s346 = int_to_ptr.vmem [resolvable:$true] %s345
      %348 = dma.vmem_to_hbm [thread:$0]  %s346, 32, %s3, [#allocation9]
    $region25: #{tpu_custom_call.1} parent=1 // pred_fallthru
      _
    // Predicated region
    $region26: #{tpu_custom_call.1} parent=1 // pred_check
      _
    $region27: #{tpu_custom_call.1} parent=1 // pred_check_branch
      %350 = sbr.rel (0) target = $region29
    $region28: #{tpu_custom_call.1} parent=1 // pred_region
      %s352 = ssub.s32 32, 32
      %353 = vsyncadd [#allocation9], %s352
      %s355 = sshll.u32 [#allocation10], 4
      %s356 = int_to_ptr.vmem [resolvable:$true] %s355
      %358 = dma.vmem_to_hbm [thread:$0]  %s356, 32, %s4, [#allocation9]
    $region29: #{tpu_custom_call.1} parent=1 // pred_fallthru
      _
    // Predicated region
    $region30: #{tpu_custom_call.1} parent=1 // pred_check
      _
    $region31: #{tpu_custom_call.1} parent=1 // pred_check_branch
      %360 = sbr.rel (0) target = $region33
    $region32: #{tpu_custom_call.1} parent=1 // pred_region
      %s362 = ssub.s32 16, 16
      %363 = vsyncadd [#allocation12], %s362
      %s365 = sshll.u32 [#allocation11], 4
      %s366 = int_to_ptr.vmem [resolvable:$true] %s365
      %368 = dma.vmem_to_hbm [thread:$0]  %s366, 16, %s5, [#allocation12]
    $region33: #{tpu_custom_call.1} parent=1 // pred_fallthru
      _
    // Predicated region
    $region34: #{tpu_custom_call.1} parent=1 // pred_check
      _
    $region35: #{tpu_custom_call.1} parent=1 // pred_check_branch
      %370 = sbr.rel (0) target = $region37
    $region36: #{tpu_custom_call.1} parent=1 // pred_region
      %371 = dma.done [#allocation4], 32
    $region37: #{tpu_custom_call.1} parent=1 // pred_fallthru
      _
    // Predicated region
    $region38: #{tpu_custom_call.1} parent=1 // pred_check
      _
    $region39: #{tpu_custom_call.1} parent=1 // pred_check_branch
      %373 = sbr.rel (0) target = $region41
    $region40: #{tpu_custom_call.1} parent=1 // pred_region
      %374 = dma.done [#allocation9], 32
    $region41: #{tpu_custom_call.1} parent=1 // pred_fallthru
      _
    // Predicated region
    $region42: #{tpu_custom_call.1} parent=1 // pred_check
      _
    $region43: #{tpu_custom_call.1} parent=1 // pred_check_branch
      %376 = sbr.rel (0) target = $region45
    $region44: #{tpu_custom_call.1} parent=1 // pred_region
      %377 = dma.done [#allocation9], 32
    $region45: #{tpu_custom_call.1} parent=1 // pred_fallthru
      _
    // Predicated region
    $region46: #{tpu_custom_call.1} parent=1 // pred_check
      _
    $region47: #{tpu_custom_call.1} parent=1 // pred_check_branch
      %379 = sbr.rel (0) target = $region49
    $region48: #{tpu_custom_call.1} parent=1 // pred_region
      %380 = dma.done [#allocation12], 16
    $region49: #{tpu_custom_call.1} parent=1 // pred_fallthru
      _
    %381 = vsyncpa [#allocation3], 1
    %382 = vsyncpa [#allocation6], 1
    %383 = vsyncpa [#allocation4], 1
    %384 = vsyncpa [#allocation9], 1
    %385 = vsyncpa [#allocation12], 1

</llo_original>
